<compile_context>
chip_gen: v5e
topology: v5e:2x2
jax: 0.10.0
libtpu: 0.0.40
codegen_flags: <defaults>
</compile_context>

<pallas_src>
import jax
import jax.numpy as jnp
from jax.experimental import pallas as pl
from jax.experimental.pallas import tpu as pltpu


# ----------------------------------------------------------------------------
# Kernels
# ----------------------------------------------------------------------------

def _se_block_direct_kernel(x_ref, w1s_ref, w2t_ref, o_ref):
    # x_ref:   (nb, C, HWp)   slab of batch elements (HWp lane-padded)
    # w1s_ref: (C, Cmid)      conv1 weight, transposed and pre-scaled by 1/HW
    # w2t_ref: (Cmid, C)      conv2 weight, transposed
    #
    # Squeeze: sum over the (zero-padded) spatial axis.  The 1/HW of the mean
    # is folded into w1s on the host, so the padding does not bias the gate.
    # Note: x_ref is re-indexed at each point of use instead of binding the
    # whole multi-MiB slab to one long-lived value (avoids vreg spills).
    s = jnp.sum(x_ref[...].astype(jnp.float32), axis=2)                     # (nb, C)

    # Excitation: 1x1 conv -> relu -> 1x1 conv -> sigmoid (tiny MXU matmuls).
    t = jnp.maximum(
        jnp.dot(s, w1s_ref[...], preferred_element_type=jnp.float32), 0.0)  # (nb, Cmid)
    gate = jax.nn.sigmoid(
        jnp.dot(t, w2t_ref[...], preferred_element_type=jnp.float32))       # (nb, C)

    # Scale: splat the per-(n,c) gate over the lane (spatial) axis.
    # NOTE: if nb does not divide N, the padded rows of the last block carry
    # garbage through the sigmoid; their out-of-range stores are dropped, so
    # the result is still correct.  Do not "fix" this by reading the pad.
    o_ref[...] = (x_ref[...] * gate[:, :, None]).astype(o_ref.dtype)


def _se_block_gate_kernel(x_ref, w1s_ref, w2t_ref, gate_ref, sum_sc):
    # Fallback pass 1: accumulate per-(n, c) sums over HW tiles, emit the gate
    # on the last tile.  Grid = (N, hw_blocks), reduction axis last.
    hw_i = pl.program_id(1)

    @pl.when(hw_i == 0)
    def _():
        sum_sc[...] = jnp.zeros_like(sum_sc)

    sum_sc[...] += jnp.sum(x_ref[...].astype(jnp.float32), axis=2)          # (1, C)

    @pl.when(hw_i == pl.num_programs(1) - 1)
    def _():
        t = jnp.maximum(
            jnp.dot(sum_sc[...], w1s_ref[...],
                    preferred_element_type=jnp.float32), 0.0)               # (1, Cmid)
        g = jax.nn.sigmoid(
            jnp.dot(t, w2t_ref[...], preferred_element_type=jnp.float32))   # (1, C)
        gate_ref[...] = g[:, :, None].astype(gate_ref.dtype)                # (1, C, 1)


def _se_block_scale_kernel(x_ref, gate_ref, o_ref):
    # Fallback pass 2: stream x tiles and apply the (1, C, 1) gate.
    o_ref[...] = (x_ref[...] * gate_ref[...]).astype(o_ref.dtype)


# ----------------------------------------------------------------------------
# Wrapper
# ----------------------------------------------------------------------------

def _tpu_defaults():
    """(target_block_bytes, tensorcores_per_chip, vmem_budget_bytes) per gen."""
    kind = ""
    try:
        kind = jax.devices()[0].device_kind.lower()
    except Exception:
        pass
    if "v7" in kind:
        # 64 MiB physical VMEM per TC, 3.2 TB/s HBM: big blocks, tight budget.
        return 8 << 20, 2, 48 << 20
    if "v6" in kind:
        return 4 << 20, 1, 64 << 20
    if "v5" in kind:
        return 2 << 20, 1, 64 << 20
    # Unknown chip: conservative.
    return 4 << 20, 1, 32 << 20


def _round_up(a, m):
    return ((a + m - 1) // m) * m


def _se_block_direct(x_flat, w1s, w2t, *, target_block_bytes, num_tc, vmem_budget):
    N, C, HWp = x_flat.shape
    Cmid = w1s.shape[1]
    itemsize = x_flat.dtype.itemsize
    bytes_per_batch = C * HWp * itemsize

    # Biggest batch slab that fits the per-generation block target.
    nb = max(1, target_block_bytes // bytes_per_batch)
    if num_tc > 1 and N > 1:
        # Multi-TC chips only: keep >= ~8 grid steps (>= ~4 per core) when N
        # permits, so each core's BlockSpec pipeline still hides DMA.
        nb = min(nb, max(1, pl.cdiv(N, 8)))
    nb = int(min(nb, N))
    grid = (pl.cdiv(N, nb),)

    block_bytes = nb * bytes_per_batch
    weight_bytes = 2 * 2 * C * Cmid * 4          # both weights, double-buffered
    vmem_need = 4 * block_bytes + weight_bytes + (4 << 20)   # x + out, 2 bufs each
    vmem_limit = int(min(vmem_budget, max(vmem_need, 16 << 20)))

    # Advisory: this op is HBM-bound.
    cost = pl.CostEstimate(
        flops=int(2 * N * C * HWp + 4 * N * C * Cmid),
        transcendentals=int(N * C),
        bytes_accessed=int(2 * N * C * HWp * itemsize + 2 * C * Cmid * 4),
    )

    return pl.pallas_call(
        _se_block_direct_kernel,
        out_shape=jax.ShapeDtypeStruct((N, C, HWp), x_flat.dtype),
        grid_spec=pltpu.PrefetchScalarGridSpec(
            num_scalar_prefetch=0,
            grid=grid,
            in_specs=[
                pl.BlockSpec((nb, C, HWp), lambda n: (n, 0, 0)),   # x slab
                pl.BlockSpec((C, Cmid), lambda n: (0, 0)),         # w1 (scaled)
                pl.BlockSpec((Cmid, C), lambda n: (0, 0)),         # w2
            ],
            out_specs=pl.BlockSpec((nb, C, HWp), lambda n: (n, 0, 0)),
        ),
        compiler_params=pltpu.CompilerParams(
            dimension_semantics=("parallel",),
            vmem_limit_bytes=vmem_limit,
        ),
        cost_estimate=cost,
    )(x_flat, w1s, w2t)


def _se_block_two_pass(x_flat, w1s, w2t, *, hw_tile, vmem_budget):
    N, C, HWp = x_flat.shape
    Cmid = w1s.shape[1]
    itemsize = x_flat.dtype.itemsize
    hw_blocks = HWp // hw_tile                    # exact by construction

    block_bytes = C * hw_tile * itemsize
    vmem_limit = int(min(vmem_budget, max(4 * block_bytes + (4 << 20), 16 << 20)))

    # Pass 1: per-(n, c) gate from HW-tiled sums.
    gate = pl.pallas_call(
        _se_block_gate_kernel,
        out_shape=jax.ShapeDtypeStruct((N, C, 1), jnp.float32),
        grid_spec=pltpu.PrefetchScalarGridSpec(
            num_scalar_prefetch=0,
            grid=(N, hw_blocks),
            in_specs=[
                pl.BlockSpec((1, C, hw_tile), lambda n, h: (n, 0, h)),
                pl.BlockSpec((C, Cmid), lambda n, h: (0, 0)),
                pl.BlockSpec((Cmid, C), lambda n, h: (0, 0)),
            ],
            out_specs=pl.BlockSpec((1, C, 1), lambda n, h: (n, 0, 0)),
            scratch_shapes=[pltpu.VMEM((1, C), jnp.float32)],
        ),
        compiler_params=pltpu.CompilerParams(
            dimension_semantics=("parallel", "arbitrary"),
            vmem_limit_bytes=vmem_limit,
        ),
    )(x_flat, w1s, w2t)

    # Pass 2: stream x again and apply the gate.
    return pl.pallas_call(
        _se_block_scale_kernel,
        out_shape=jax.ShapeDtypeStruct((N, C, HWp), x_flat.dtype),
        grid_spec=pltpu.PrefetchScalarGridSpec(
            num_scalar_prefetch=0,
            grid=(N, hw_blocks),
            in_specs=[
                pl.BlockSpec((1, C, hw_tile), lambda n, h: (n, 0, h)),
                pl.BlockSpec((1, C, 1), lambda n, h: (n, 0, 0)),
            ],
            out_specs=pl.BlockSpec((1, C, hw_tile), lambda n, h: (n, 0, h)),
        ),
        compiler_params=pltpu.CompilerParams(
            dimension_semantics=("parallel", "parallel"),
            vmem_limit_bytes=vmem_limit,
        ),
    )(x_flat, gate)


def se_block(x, w1, w2, *, target_block_bytes=None):
    """SEBlock forward.  x: [N, C, H, W]; w1: [Cmid, C]; w2: [C, Cmid]."""
    N, C, H, W = x.shape
    Cmid = w1.shape[0]
    HW = H * W
    itemsize = x.dtype.itemsize

    gen_block, num_tc, vmem_budget = _tpu_defaults()
    if target_block_bytes is None:
        target_block_bytes = gen_block

    # Fold the 1/HW of the global-average-pool into conv1 (sum instead of
    # mean); transpose both 1x1-conv weights on the host so the excitation
    # matmuls inside the kernel are lane-dense.
    w1s = (jnp.transpose(w1).astype(jnp.float32) / jnp.float32(HW))      # (C, Cmid)
    w2t = jnp.transpose(w2).astype(jnp.float32)                          # (Cmid, C)

    bytes_per_batch_128 = C * _round_up(HW, 128) * itemsize
    x_flat = x.reshape(N, C, HW)

    if bytes_per_batch_128 <= 2 * target_block_bytes:
        # Direct path: one kernel, batch-tiled streaming.
        HWp = _round_up(HW, 128)                 # lane-dense stores
        if HWp != HW:
            x_flat = jnp.pad(x_flat, ((0, 0), (0, 0), (0, HWp - HW)))
        out_flat = _se_block_direct(
            x_flat, w1s, w2t,
            target_block_bytes=target_block_bytes,
            num_tc=num_tc, vmem_budget=vmem_budget)
    else:
        # Fallback: a single batch element blows the block budget (large
        # feature maps); tile the spatial axis and do two passes.
        hw_tile = (target_block_bytes // (C * itemsize)) // 128 * 128
        hw_tile = int(max(128, min(hw_tile, _round_up(HW, 128))))
        HWp = _round_up(HW, hw_tile)             # exact tiling, zero pad
        if HWp != HW:
            x_flat = jnp.pad(x_flat, ((0, 0), (0, 0), (0, HWp - HW)))
        out_flat = _se_block_two_pass(
            x_flat, w1s, w2t, hw_tile=hw_tile, vmem_budget=vmem_budget)

    if HWp != HW:
        out_flat = out_flat[:, :, :HW]
    return out_flat.reshape(N, C, H, W)


# ----------------------------------------------------------------------------
# Plain-JAX reference (mirrors the PyTorch forward)
# ----------------------------------------------------------------------------

def se_block_ref(x, w1, w2):
    mean = jnp.mean(x.astype(jnp.float32), axis=(2, 3), keepdims=True)   # (N,C,1,1)
    t = jnp.einsum("oc,nchw->nohw", w1, mean)                            # conv1 (1x1)
    t = jnp.maximum(t, 0.0)
    s = jnp.einsum("oc,nchw->nohw", w2, t)                               # conv2 (1x1)
    s = jax.nn.sigmoid(s)
    return x * s


if __name__ == "__main__":
    # SEBlock(in_channels=32, reduction=8, bias=False)
    N, C, H, W = 2, 32, 16, 16
    reduction = 8
    Cmid = C // reduction

    key = jax.random.PRNGKey(0)
    kx, k1, k2, kx2 = jax.random.split(key, 4)

    x = jax.random.normal(kx, (N, C, H, W), dtype=jnp.float32)
    # torch conv weights (out, in, 1, 1) -> (out, in) for 1x1 convs
    w1 = jax.random.normal(k1, (Cmid, C), dtype=jnp.float32) * 0.1
    w2 = jax.random.normal(k2, (C, Cmid), dtype=jnp.float32) * 0.1

    # 1) Direct streaming path (HW already a multiple of 128).
    out = jax.block_until_ready(se_block(x, w1, w2))
    ref = se_block_ref(x, w1, w2)
    assert out.shape == (N, C, H, W)
    assert jnp.allclose(out, ref, rtol=1e-4, atol=1e-5), "direct path mismatch"

    # 2) Direct path with lane padding (HW = 144 -> padded to 256).
    x2 = jax.random.normal(kx2, (N, C, 12, 12), dtype=jnp.float32)
    out2 = jax.block_until_ready(se_block(x2, w1, w2))
    assert jnp.allclose(out2, se_block_ref(x2, w1, w2), rtol=1e-4, atol=1e-5), \
        "padded direct path mismatch"

    # 3) Two-pass spatial-tiled fallback, forced via a tiny block budget.
    out3 = jax.block_until_ready(se_block(x2, w1, w2, target_block_bytes=8 * 1024))
    assert jnp.allclose(out3, se_block_ref(x2, w1, w2), rtol=1e-4, atol=1e-5), \
        "two-pass fallback mismatch"

    print("KERNEL_OK")
</pallas_src>

<mosaic_0001>
module attributes {stable_mosaic.version = 11 : i64} {
  func.func @_se_block_direct_kernel(%arg0: i32, %arg1: memref<2x32x256xf32, #tpu.memory_space<vmem>>, %arg2: memref<32x4xf32, #tpu.memory_space<vmem>>, %arg3: memref<4x32xf32, #tpu.memory_space<vmem>>, %arg4: memref<2x32x256xf32, #tpu.memory_space<vmem>>) attributes {dimension_semantics = [#tpu.dimension_semantics<parallel>], iteration_bounds = array<i64: 1>, scalar_prefetch = 0 : i64, scratch_operands = 0 : i64, tpu.core_type = #tpu.core_type<tc>, window_params = [{transform_indices = @transform_0, window_bounds = array<i64: 2, 32, 256>}, {pipeline_mode = #tpu.pipeline_mode<synchronous>, transform_indices = @transform_1, window_bounds = array<i64: 32, 4>}, {pipeline_mode = #tpu.pipeline_mode<synchronous>, transform_indices = @transform_2, window_bounds = array<i64: 4, 32>}, {transform_indices = @transform_3, window_bounds = array<i64: 2, 32, 256>}]} {
    %c0 = arith.constant 0 : index
    %c0_0 = arith.constant 0 : index
    %c0_1 = arith.constant 0 : index
    %0 = vector.load %arg1[%c0, %c0_0, %c0_1] : memref<2x32x256xf32, #tpu.memory_space<vmem>>, vector<2x32x256xf32>
    %cst = arith.constant dense<0.000000e+00> : vector<2x32xf32>
    %1 = vector.multi_reduction <add>, %0, %cst [2] : vector<2x32x256xf32> to vector<2x32xf32>
    %c0_2 = arith.constant 0 : index
    %c0_3 = arith.constant 0 : index
    %2 = vector.load %arg2[%c0_2, %c0_3] : memref<32x4xf32, #tpu.memory_space<vmem>>, vector<32x4xf32>
    %cst_4 = arith.constant dense<0.000000e+00> : vector<2x4xf32>
    %3 = tpu.matmul %1, %2, %cst_4 {dimension_numbers = #tpu.dot_dimension_numbers<[1], [0], [0], [1], [0, 0, 1, 1], [], []>} : vector<2x32xf32>, vector<32x4xf32>, vector<2x4xf32> -> vector<2x4xf32>
    %cst_5 = arith.constant 0.000000e+00 : f32
    %4 = vector.broadcast %cst_5 : f32 to vector<2x4xf32>
    %5 = arith.maximumf %3, %4 : vector<2x4xf32>
    %c0_6 = arith.constant 0 : index
    %c0_7 = arith.constant 0 : index
    %6 = vector.load %arg3[%c0_6, %c0_7] : memref<4x32xf32, #tpu.memory_space<vmem>>, vector<4x32xf32>
    %cst_8 = arith.constant dense<0.000000e+00> : vector<2x32xf32>
    %7 = tpu.matmul %5, %6, %cst_8 {dimension_numbers = #tpu.dot_dimension_numbers<[1], [0], [0], [1], [0, 0, 1, 1], [], []>} : vector<2x4xf32>, vector<4x32xf32>, vector<2x32xf32> -> vector<2x32xf32>
    %8 = arith.negf %7 : vector<2x32xf32>
    %9 = math.exp %8 : vector<2x32xf32>
    %cst_9 = arith.constant 1.000000e+00 : f32
    %10 = vector.broadcast %cst_9 : f32 to vector<2x32xf32>
    %11 = arith.addf %10, %9 : vector<2x32xf32>
    %12 = arith.divf %10, %11 : vector<2x32xf32>
    %c0_10 = arith.constant 0 : index
    %c0_11 = arith.constant 0 : index
    %c0_12 = arith.constant 0 : index
    %13 = vector.load %arg1[%c0_10, %c0_11, %c0_12] : memref<2x32x256xf32, #tpu.memory_space<vmem>>, vector<2x32x256xf32>
    %14 = vector.shape_cast %12 : vector<2x32xf32> to vector<2x32x1xf32>
    %15 = vector.broadcast %14 : vector<2x32x1xf32> to vector<2x32x256xf32>
    %16 = arith.mulf %13, %15 : vector<2x32x256xf32>
    %c0_13 = arith.constant 0 : index
    %c0_14 = arith.constant 0 : index
    %c0_15 = arith.constant 0 : index
    %17 = vector.load %arg4[%c0_13, %c0_14, %c0_15] : memref<2x32x256xf32, #tpu.memory_space<vmem>>, vector<2x32x256xf32>
    tpu.vector_store %arg4[%c0_13, %c0_14, %c0_15], %16 {strides = array<i32>} : memref<2x32x256xf32, #tpu.memory_space<vmem>>, vector<2x32x256xf32>,
    return
  }
  func.func @transform_0(%arg0: i32) -> (i32, i32, i32) {
    %c0_i32 = arith.constant 0 : i32
    %c0_i32_0 = arith.constant 0 : i32
    %c0_i32_1 = arith.constant 0 : i32
    return %arg0, %c0_i32, %c0_i32_0 : i32, i32, i32
  }
  func.func @transform_1(%arg0: i32) -> (i32, i32) {
    %c0_i32 = arith.constant 0 : i32
    %c0_i32_0 = arith.constant 0 : i32
    %c0_i32_1 = arith.constant 0 : i32
    return %c0_i32, %c0_i32_0 : i32, i32
  }
  func.func @transform_2(%arg0: i32) -> (i32, i32) {
    %c0_i32 = arith.constant 0 : i32
    %c0_i32_0 = arith.constant 0 : i32
    %c0_i32_1 = arith.constant 0 : i32
    return %c0_i32, %c0_i32_0 : i32, i32
  }
  func.func @transform_3(%arg0: i32) -> (i32, i32, i32) {
    %c0_i32 = arith.constant 0 : i32
    %c0_i32_0 = arith.constant 0 : i32
    %c0_i32_1 = arith.constant 0 : i32
    return %arg0, %c0_i32, %c0_i32_0 : i32, i32, i32
  }
}

</mosaic_0001>

<llo_original>
// kernel: tpu_custom_call.1
$region0: #{tpu_custom_call.1}
  #allocation0 [shape = 'u32[]', space=smem, size = 0x4, offset = 0x4, fixed_abs, tag = 'smem constant byte address 0x4 - core index']
  #allocation1 [shape = 'u32[72,128]{1,0:T(1,128)}', space=vmem, size = 0x9000, scoped, tag = 'internal scratch']
  %s0 = inlined_call_operand.hbm [shape: f32[2,32,256], index: 0, kind: input, shape index: {}]
  %s1 = inlined_call_operand.vmem [shape: f32[32,4], index: 1, kind: input, shape index: {}]
  %s2 = inlined_call_operand.vmem [shape: f32[4,32], index: 2, kind: input, shape index: {}]
  %s3 = inlined_call_operand.hbm [shape: f32[2,32,256], index: 3, kind: output, shape index: {}]
  %s4 = sld [smem:[#allocation0]]
  $region26: #{tpu_custom_call.1} parent=0
    _
  %s6 = ssub.s32 1, %s4
  %s7 = scalar_select 0, %s6, %s4
  $region1: #{tpu_custom_call.1} parent=0
    #allocation2 [shape = 'u8[65536]{0}', space=vmem, size = 0x10000, scoped, tag = 'input window, operand 0, single buffered']
    #allocation3 [shape = 's32[1]{0}', space=sflag, size = 0x4, scoped, tag = 'scoped memory for tpu_custom_call.1']
    #allocation4 [shape = 's32[1]{0}', space=sflag, size = 0x4, scoped, tag = 'scoped memory for tpu_custom_call.1']
    #allocation5 [shape = 'u8[65536]{0}', space=vmem, size = 0x10000, scoped, tag = 'output window, operand 0, single buffered']
    %8 = vsyncpa [#allocation3], 0
    %9 = vsyncpa [#allocation4], 0
    // Predicated region
    $region2: #{tpu_custom_call.1} parent=1 // pred_check
      _
    $region3: #{tpu_custom_call.1} parent=1 // pred_check_branch
      %11 = sbr.rel (0) target = $region5
    $region4: #{tpu_custom_call.1} parent=1 // pred_region
      %13 = vsyncadd [#allocation3], 0
      %s14 = sshll.u32 %s0, 4
      %s15 = int_to_ptr.hbm [resolvable:$true] %s14
      %s16 = sshll.u32 [#allocation2], 4
      %s17 = int_to_ptr.vmem [resolvable:$true] %s16
      %22 = dma.hbm_to_vmem [thread:$0]  %s15, 2048, %s17, [#allocation3], 256, 256, 16
    $region5: #{tpu_custom_call.1} parent=1 // pred_fallthru
      _
    // Predicated region
    $region6: #{tpu_custom_call.1} parent=1 // pred_check
      _
    $region7: #{tpu_custom_call.1} parent=1 // pred_check_branch
      %24 = sbr.rel (0) target = $region9
    $region8: #{tpu_custom_call.1} parent=1 // pred_region
      _
    $region9: #{tpu_custom_call.1} parent=1 // pred_fallthru
      _
    // Predicated region
    $region10: #{tpu_custom_call.1} parent=1 // pred_check
      _
    $region11: #{tpu_custom_call.1} parent=1 // pred_check_branch
      %26 = sbr.rel (0) target = $region13
    $region12: #{tpu_custom_call.1} parent=1 // pred_region
      _
    $region13: #{tpu_custom_call.1} parent=1 // pred_fallthru
      _
    // Predicated region
    $region14: #{tpu_custom_call.1} parent=1 // pred_check
      _
    $region15: #{tpu_custom_call.1} parent=1 // pred_check_branch
      %28 = sbr.rel (0) target = $region17
    $region16: #{tpu_custom_call.1} parent=1 // pred_region
      %30 = dma.done [#allocation3], 2048
    $region17: #{tpu_custom_call.1} parent=1 // pred_fallthru
      _
    %v31 = vld [vmem:[#allocation2] sm:$0xff]
    %v32 = vld [vmem:[#allocation2 + $0x8] sm:$0xff]
    %v33 = vld [vmem:[#allocation2 + $0x10] sm:$0xff]
    %v34 = vld [vmem:[#allocation2 + $0x18] sm:$0xff]
    %v35 = vld [vmem:[#allocation2 + $0x20] sm:$0xff]
    %v36 = vld [vmem:[#allocation2 + $0x28] sm:$0xff]
    %v37 = vld [vmem:[#allocation2 + $0x30] sm:$0xff]
    %v38 = vld [vmem:[#allocation2 + $0x38] sm:$0xff]
    %v39 = vld [vmem:[#allocation2 + $0x40] sm:$0xff]
    %v40 = vld [vmem:[#allocation2 + $0x48] sm:$0xff]
    %v41 = vld [vmem:[#allocation2 + $0x50] sm:$0xff]
    %v42 = vld [vmem:[#allocation2 + $0x58] sm:$0xff]
    %v43 = vld [vmem:[#allocation2 + $0x60] sm:$0xff]
    %v44 = vld [vmem:[#allocation2 + $0x68] sm:$0xff]
    %v45 = vld [vmem:[#allocation2 + $0x70] sm:$0xff]
    %v46 = vld [vmem:[#allocation2 + $0x78] sm:$0xff]
    %v47 = vadd.f32 %v31, %v32
    %48 = vadd.xlane.f32.xlu0 %v47
    %v49 = vpop.xlane.xlu0 %48
    %v50 = vadd.f32 %v33, %v34
    %51 = vadd.xlane.f32.xlu0 %v50
    %v52 = vpop.xlane.xlu0 %51
    %v53 = vadd.f32 %v35, %v36
    %54 = vadd.xlane.f32.xlu0 %v53
    %v55 = vpop.xlane.xlu0 %54
    %v56 = vadd.f32 %v37, %v38
    %57 = vadd.xlane.f32.xlu0 %v56
    %v58 = vpop.xlane.xlu0 %57
    %v59 = vadd.f32 %v39, %v40
    %60 = vadd.xlane.f32.xlu0 %v59
    %v61 = vpop.xlane.xlu0 %60
    %v62 = vadd.f32 %v41, %v42
    %63 = vadd.xlane.f32.xlu0 %v62
    %v64 = vpop.xlane.xlu0 %63
    %v65 = vadd.f32 %v43, %v44
    %66 = vadd.xlane.f32.xlu0 %v65
    %v67 = vpop.xlane.xlu0 %66
    %v68 = vadd.f32 %v45, %v46
    %69 = vadd.xlane.f32.xlu0 %v68
    %v70 = vpop.xlane.xlu0 %69
    %v71 = vld [vmem:[%s1] sm:$0xff]
    %v72 = vld [vmem:[%s1 + $0x8] sm:$0xff]
    %v73 = vld [vmem:[%s1 + $0x10] sm:$0xff]
    %v74 = vld [vmem:[%s1 + $0x18] sm:$0xff]
    %v83 = vlaneseq
    %v84 = vand.u32 %v83, 127
    %v85 = vperm.slane %v49, %v84
    %v86 = vadd.s32 %v84, 4294967288
    %v87 = vperm.slane %v52, %v86
    %vm88 = vcmask 130112
    %v89 = vsel %vm88, %v87, %v85
    %v90 = vadd.s32 %v84, 4294967280
    %v91 = vperm.slane %v55, %v90
    %vm92 = vcmask 195712
    %v93 = vsel %vm92, %v91, %v89
    %v94 = vadd.s32 %v84, 4294967272
    %v95 = vperm.slane %v58, %v94
    %vm96 = vcmask 261312
    %v97 = vsel %vm96, %v95, %v93
    %v98 = vperm.slane %v61, %v84
    %v99 = vperm.slane %v64, %v86
    %v100 = vsel %vm88, %v99, %v98
    %v101 = vperm.slane %v67, %v90
    %v102 = vsel %vm92, %v101, %v100
    %v103 = vperm.slane %v70, %v94
    %v104 = vsel %vm96, %v103, %v102
    %vm105 = vcmask 1041409
    %v106 = vsel %vm105, %v104, %v97
    %vm107 = vcmask 261120
    %v108 = vsel %vm107, %v106, 0
    %110 = vmatpush.msra.mxu0 0.0
    %111 = vmatpush.msra.mxu0 0.0
    %112 = vmatpush.msra.mxu0 0.0
    %113 = vmatpush.msra.mxu0 0.0
    %114 = vmatpush.msra.mxu0 0.0
    %115 = vmatpush.msra.mxu0 0.0
    %116 = vmatpush.msra.mxu0 0.0
    %117 = vmatpush.msra.mxu0 0.0
    %118 = vmatpush.msra.mxu0 0.0
    %119 = vmatpush.msra.mxu0 0.0
    %120 = vmatpush.msra.mxu0 0.0
    %121 = vmatpush.msra.mxu0 0.0
    %122 = vmatpush.msra.mxu0 %v74
    %123 = vmatpush.msra.mxu0 %v73
    %124 = vmatpush.msra.mxu0 %v72
    %125 = vmatpush.msra.mxu0 %v71
    %126 = vmatmul.f32.gmra.mxu0 %v108
    %v127 = vpop.f32.mrf.mxu0
    %v128 = vadd.f32 0.0, %v127
    %129 = vdwg.mxu0
    %v130 = vmax.f32 %v128, 0.0
    %v131 = vld [vmem:[%s2] sm:$0xf]
    %vm132 = vcmask 31744
    %v134 = vsel %vm132, %v130, 0
    %vm136 = vcmask 1043456
    %v138 = vsel %vm136, %v131, 0
    %140 = vmatpush.msra.mxu0 0.0
    %141 = vmatpush.msra.mxu0 0.0
    %142 = vmatpush.msra.mxu0 0.0
    %143 = vmatpush.msra.mxu0 0.0
    %144 = vmatpush.msra.mxu0 0.0
    %145 = vmatpush.msra.mxu0 0.0
    %146 = vmatpush.msra.mxu0 0.0
    %147 = vmatpush.msra.mxu0 0.0
    %148 = vmatpush.msra.mxu0 0.0
    %149 = vmatpush.msra.mxu0 0.0
    %150 = vmatpush.msra.mxu0 0.0
    %151 = vmatpush.msra.mxu0 0.0
    %152 = vmatpush.msra.mxu0 0.0
    %153 = vmatpush.msra.mxu0 0.0
    %154 = vmatpush.msra.mxu0 0.0
    %155 = vmatpush.msra.mxu0 %v138
    %156 = vmatmul.f32.gmra.mxu0 %v134
    %v157 = vpop.f32.mrf.mxu0
    %v158 = vadd.f32 0.0, %v157
    %159 = vdwg.mxu0
    %v160 = vxor.u32 %v158, 2147483648
    %v161 = vmul.f32 %v160, 1.442695
    %v162 = vpow.pop %v161
    %v163 = vadd.f32 %v162, 1.0
    %v164 = vrcp.pop %v163
    %v165 = vmul.f32 %v163, %v164
    %v166 = vsub.f32 1.0, %v165
    %v167 = vmul.f32 %v164, %v166
    %v168 = vadd.f32 %v164, %v167
    %vm169 = vweird.f32 %v163
    %vm170 = vweird.f32 %v164
    %vm171 = vmor %vm169, %vm170
    %v172 = vsel %vm171, %v164, %v168
    %v173 = vand.u32 2147483647, %v163
    %vm174 = vcmp.eq.f32.partialorder %v173, 8.507059e+37
    %v175 = vand.u32 %v163, 2147483648
    %v176 = vor.u32 1.1754944e-38, %v175
    %v177 = vsel %vm174, %v176, %v172
    %v178 = vmul.f32 1.0, %v177
    %v179 = vperm.slane %v178, 0
    %v180 = vlaneseq
    %v181 = vshrl.u32 %v180, 7
    %183 = vset.pattern.permute.xlu0 %v181
    %184 = vperm.xlu0 %183, %v179
    %v185 = vpop.permute.xlu0 %184
    %v186 = vlaneseq
    %v187 = vshrl.u32 %v186, 7
    %v188 = vadd.s32 %v187, 8
    %189 = vset.pattern.permute.xlu0 %v188
    %190 = vperm.xlu0 %189, %v179
    %v191 = vpop.permute.xlu0 %190
    %v192 = vlaneseq
    %v193 = vshrl.u32 %v192, 7
    %v194 = vadd.s32 %v193, 16
    %195 = vset.pattern.permute.xlu0 %v194
    %196 = vperm.xlu0 %195, %v179
    %v197 = vpop.permute.xlu0 %196
    %v198 = vlaneseq
    %v199 = vshrl.u32 %v198, 7
    %v200 = vadd.s32 %v199, 24
    %201 = vset.pattern.permute.xlu0 %v200
    %202 = vperm.xlu0 %201, %v179
    %v203 = vpop.permute.xlu0 %202
    %v204 = vperm.slane %v178, 1
    %v205 = vlaneseq
    %v206 = vshrl.u32 %v205, 7
    %208 = vset.pattern.permute.xlu0 %v206
    %209 = vperm.xlu0 %208, %v204
    %v210 = vpop.permute.xlu0 %209
    %v211 = vlaneseq
    %v212 = vshrl.u32 %v211, 7
    %v213 = vadd.s32 %v212, 8
    %214 = vset.pattern.permute.xlu0 %v213
    %215 = vperm.xlu0 %214, %v204
    %v216 = vpop.permute.xlu0 %215
    %v217 = vlaneseq
    %v218 = vshrl.u32 %v217, 7
    %v219 = vadd.s32 %v218, 16
    %220 = vset.pattern.permute.xlu0 %v219
    %221 = vperm.xlu0 %220, %v204
    %v222 = vpop.permute.xlu0 %221
    %v223 = vlaneseq
    %v224 = vshrl.u32 %v223, 7
    %v225 = vadd.s32 %v224, 24
    %226 = vset.pattern.permute.xlu0 %v225
    %227 = vperm.xlu0 %226, %v204
    %v228 = vpop.permute.xlu0 %227
    %v229 = vmul.f32 %v31, %v185
    %v230 = vmul.f32 %v32, %v185
    %v231 = vmul.f32 %v33, %v191
    %v232 = vmul.f32 %v34, %v191
    %v233 = vmul.f32 %v35, %v197
    %v234 = vmul.f32 %v36, %v197
    %v235 = vmul.f32 %v37, %v203
    %v236 = vmul.f32 %v38, %v203
    %v237 = vmul.f32 %v39, %v210
    %v238 = vmul.f32 %v40, %v210
    %v239 = vmul.f32 %v41, %v216
    %v240 = vmul.f32 %v42, %v216
    %v241 = vmul.f32 %v43, %v222
    %v242 = vmul.f32 %v44, %v222
    %v243 = vmul.f32 %v45, %v228
    %v244 = vmul.f32 %v46, %v228
    %245 = vst [vmem:[#allocation5] sm:$0xff] %v229
    %246 = vst [vmem:[#allocation5 + $0x8] sm:$0xff] %v230
    %247 = vst [vmem:[#allocation5 + $0x10] sm:$0xff] %v231
    %248 = vst [vmem:[#allocation5 + $0x18] sm:$0xff] %v232
    %249 = vst [vmem:[#allocation5 + $0x20] sm:$0xff] %v233
    %250 = vst [vmem:[#allocation5 + $0x28] sm:$0xff] %v234
    %251 = vst [vmem:[#allocation5 + $0x30] sm:$0xff] %v235
    %252 = vst [vmem:[#allocation5 + $0x38] sm:$0xff] %v236
    %253 = vst [vmem:[#allocation5 + $0x40] sm:$0xff] %v237
    %254 = vst [vmem:[#allocation5 + $0x48] sm:$0xff] %v238
    %255 = vst [vmem:[#allocation5 + $0x50] sm:$0xff] %v239
    %256 = vst [vmem:[#allocation5 + $0x58] sm:$0xff] %v240
    %257 = vst [vmem:[#allocation5 + $0x60] sm:$0xff] %v241
    %258 = vst [vmem:[#allocation5 + $0x68] sm:$0xff] %v242
    %259 = vst [vmem:[#allocation5 + $0x70] sm:$0xff] %v243
    %260 = vst [vmem:[#allocation5 + $0x78] sm:$0xff] %v244
    // Predicated region
    $region18: #{tpu_custom_call.1} parent=1 // pred_check
      _
    $region19: #{tpu_custom_call.1} parent=1 // pred_check_branch
      %262 = sbr.rel (0) target = $region21
    $region20: #{tpu_custom_call.1} parent=1 // pred_region
      %264 = vsyncadd [#allocation4], 0
      %s265 = sshll.u32 [#allocation5], 4
      %s266 = int_to_ptr.vmem [resolvable:$true] %s265
      %s267 = sshll.u32 %s3, 4
      %s268 = int_to_ptr.hbm [resolvable:$true] %s267
      %273 = dma.vmem_to_hbm [thread:$0]  %s266, 2048, %s268, [#allocation4], 256, 256, 16
    $region21: #{tpu_custom_call.1} parent=1 // pred_fallthru
      _
    // Predicated region
    $region22: #{tpu_custom_call.1} parent=1 // pred_check
      _
    $region23: #{tpu_custom_call.1} parent=1 // pred_check_branch
      %275 = sbr.rel (0) target = $region25
    $region24: #{tpu_custom_call.1} parent=1 // pred_region
      %277 = dma.done [#allocation4], 2048
    $region25: #{tpu_custom_call.1} parent=1 // pred_fallthru
      _
    %278 = vsyncpa [#allocation3], 1
    %279 = vsyncpa [#allocation4], 1

</llo_original>
